<compile_context>
chip_gen: v6e
topology: v6e:2x2x1
jax: 0.10.0
libtpu: 0.0.40
codegen_flags: <defaults>
</compile_context>

<pallas_src>
import functools

import jax
import jax.numpy as jnp
from jax.experimental import pallas as pl
from jax.experimental.pallas import tpu as pltpu


_EPS = 1e-8       # matches nn.CosineSimilarity(eps=1e-8) per-vector clamp
_NEG_BIG = -1e30  # "minus infinity" for masking (exp() underflows to exactly 0)


@functools.lru_cache(maxsize=None)
def _device_kind() -> str:
    try:
        return jax.devices()[0].device_kind.lower()
    except Exception:
        return ""


@functools.lru_cache(maxsize=None)
def _preferred_row_tile() -> int:
    # v5e's MXU is 4x(128x128) -> prefer 128-row tiles; v6e/v7x are 256x256 -> 256.
    kind = _device_kind()
    if "v5" in kind and ("lite" in kind or "5e" in kind):
        return 128
    return 256


@functools.lru_cache(maxsize=None)
def _vmem_limit_bytes():
    # Leave headroom below physical VMEM where the generation is known.
    kind = _device_kind()
    if "v7" in kind:
        return 48 * 1024 * 1024   # v7x: 64 MiB / TensorCore
    if "v6" in kind or "v5" in kind:
        return 96 * 1024 * 1024   # v5e/v5p/v6e: 128 MiB / TensorCore
    return None                   # unknown part: keep the compiler default


def _choose_row_tile(batch_size: int, min_multiple: int):
    # TM must divide B (so the positive-pair rows of a tile form one contiguous tile)
    # and be a multiple of the sublane tiling (8 for f32; 16 for packed bf16 so the
    # in-kernel pl.ds slices of the resident block stay tile-aligned).
    for tm in (_preferred_row_tile(), 256, 128, 64, 32, 16, 8):
        if tm % min_multiple == 0 and batch_size % tm == 0:
            return tm
    return None


def _make_instance_loss_kernel(temperature: float, tm: int, pair_off: int,
                               num_tiles: int, n: int):
    inv_temp = float(1.0 / float(temperature))

    def kernel(zc_ref, out_ref):
        # zc_ref : (N, D) pre-L2-normalized rows, resident in VMEM (constant block idx).
        # out_ref: (1, 1, TM) per-row losses for this row tile (lane-dense store).
        t = pl.program_id(0)
        r0 = pl.multiple_of(t * tm, tm)                              # rows of this tile
        p0 = pl.multiple_of(((t + pair_off) % num_tiles) * tm, tm)   # their positive pairs

        rows = zc_ref[pl.ds(r0, tm), :]    # (TM, D), compute dtype (bf16 or f32)
        pairs = zc_ref[pl.ds(p0, tm), :]   # (TM, D)

        rows32 = rows.astype(jnp.float32)
        pairs32 = pairs.astype(jnp.float32)
        lhs32 = rows32 * jnp.float32(inv_temp)     # fold 1/T into the small lhs only
        lhs = lhs32.astype(zc_ref.dtype)

        # sim[i, k] = cos(z_row_i, z_k) / T for this row tile.
        # Contract last dims of both operands (MXU trans_b path, no transpose copy);
        # bf16 operands with f32 accumulation by default.
        sim = jax.lax.dot_general(
            lhs, zc_ref[...],
            dimension_numbers=(((1,), (1,)), ((), ())),
            preferred_element_type=jnp.float32,
        )  # (TM, N)

        # Mask this tile's diagonal of the *global* similarity matrix: for rows
        # [r0, r0+TM) it lives in columns [r0, r0+TM).  Masking is numerically safe,
        # unlike the previous `sum_exp - exp(diag - m)` which cancels catastrophically
        # at low temperature / well-separated embeddings.
        col_ids = jax.lax.broadcasted_iota(jnp.int32, (tm, n), 1)
        row_ids = r0 + jax.lax.broadcasted_iota(jnp.int32, (tm, n), 0)
        sim = jnp.where(col_ids == row_ids, jnp.float32(_NEG_BIG), sim)

        # Positive-pair logit: O(TM*D) row-wise dot (already scaled by 1/T via lhs32).
        pos = jnp.sum(lhs32 * pairs32, axis=-1)          # (TM,)

        # Row-wise logsumexp over k != i (masked diagonal contributes exp -> 0; the
        # positive column is included exactly once, matching the PyTorch logits).
        m = jnp.max(sim, axis=-1, keepdims=True)          # (TM, 1)
        sum_exp = jnp.sum(jnp.exp(sim - m), axis=-1)      # (TM,)
        lse = m[:, 0] + jnp.log(sum_exp)                  # (TM,)

        # Per-row cross-entropy(label=0) = logsumexp(all logits) - positive.
        out_ref[0, 0, :] = lse - pos

    return kernel


@functools.partial(jax.jit, static_argnames=("temperature", "use_bf16_matmul"))
def instance_loss(z_i: jax.Array, z_j: jax.Array, *, temperature: float,
                  use_bf16_matmul: bool = True) -> jax.Array:
    """Equivalent of InstanceLoss(batch_size, temperature).forward(z_i, z_j)."""
    assert z_i.shape == z_j.shape and z_i.ndim == 2
    b, d = z_i.shape
    n = 2 * b

    compute_dtype = jnp.bfloat16 if use_bf16_matmul else jnp.float32
    tm = _choose_row_tile(b, 16 if compute_dtype == jnp.bfloat16 else 8)
    if tm is None and compute_dtype == jnp.bfloat16:
        # TODO(synk): pad rows to a multiple of 16 instead of falling back to f32.
        compute_dtype = jnp.float32
        tm = _choose_row_tile(b, 8)
    if tm is None:
        # TODO(synk): pad + mask rows to support batch sizes that are not multiples of 8.
        raise ValueError("batch_size must be a multiple of 8 for the tiled kernel")

    num_tiles = n // tm
    pair_off = b // tm  # tile offset of the positive-pair rows ((row + B) mod N)

    # Normalize ONCE here (fuses with the concatenate pass over HBM); the kernel sees
    # pre-normalized rows already in the matmul compute dtype.
    z = jnp.concatenate([z_i, z_j], axis=0).astype(jnp.float32)
    sq = jnp.sum(z * z, axis=-1, keepdims=True)
    zn = (z * jax.lax.rsqrt(jnp.maximum(sq, jnp.float32(_EPS * _EPS)))).astype(compute_dtype)

    kernel = _make_instance_loss_kernel(float(temperature), tm, pair_off, num_tiles, n)

    # TODO(synk): for very large N*D on v7x (64 MiB/TC) single-buffer the resident column
    # block (pl.Buffered(1)) or stream column tiles with an online/flash-style logsumexp.
    per_row = pl.pallas_call(
        kernel,
        out_shape=jax.ShapeDtypeStruct((num_tiles, 1, tm), jnp.float32),
        grid_spec=pltpu.PrefetchScalarGridSpec(
            num_scalar_prefetch=0,
            grid=(num_tiles,),
            in_specs=[
                # All (pre-normalized) rows; constant block index -> DMA'd once per core
                # and stays resident across the whole row-tile loop.
                pl.BlockSpec((n, d), lambda t: (0, 0)),
            ],
            out_specs=pl.BlockSpec((1, 1, tm), lambda t: (t, 0, 0)),
        ),
        compiler_params=pltpu.CompilerParams(
            # Distinct output block per row tile -> the row axis is truly parallel
            # (lets Mosaic shard row tiles across v7x's two TensorCores).
            dimension_semantics=("parallel",),
            vmem_limit_bytes=_vmem_limit_bytes(),
        ),
    )(zn)

    return jnp.sum(per_row) / jnp.float32(n)


def _reference_loss(z_i, z_j, temperature):
    # Pure-JAX mirror of the PyTorch module (CosineSimilarity eps=1e-8,
    # CrossEntropyLoss(reduction='sum') / N, positive pair at label 0).
    z = jnp.concatenate([z_i, z_j], axis=0).astype(jnp.float32)
    n = z.shape[0]
    b = n // 2
    norm = jnp.maximum(jnp.sqrt(jnp.sum(z * z, axis=-1, keepdims=True)), _EPS)
    zn = z / norm
    sim = jnp.matmul(zn, zn.T, precision=jax.lax.Precision.HIGHEST) / temperature
    eye = jnp.eye(n, dtype=bool)
    masked = jnp.where(eye, _NEG_BIG, sim)
    m = jnp.max(masked, axis=-1, keepdims=True)
    lse = m[:, 0] + jnp.log(jnp.sum(jnp.exp(masked - m), axis=-1))
    idx = jnp.arange(n)
    pos = sim[idx, (idx + b) % n]
    return jnp.sum(lse - pos) / n


if __name__ == "__main__":
    batch_size = 16   # N = 32 rows; TM=16 keeps the bf16 path's 16-row alignment
    hidden = 32
    temperature = 0.5

    key = jax.random.PRNGKey(0)
    k1, k2 = jax.random.split(key)
    z_i = jax.random.normal(k1, (batch_size, hidden), dtype=jnp.float32)
    z_j = jax.random.normal(k2, (batch_size, hidden), dtype=jnp.float32)

    ref = jax.block_until_ready(_reference_loss(z_i, z_j, temperature))

    # f32 MXU path (closest to the f32 PyTorch module).
    loss_f32 = jax.block_until_ready(
        instance_loss(z_i, z_j, temperature=temperature, use_bf16_matmul=False))
    assert jnp.allclose(loss_f32, ref, rtol=2e-3, atol=2e-3), (loss_f32, ref)

    # Default bf16-MXU path (f32 accumulation) -- looser tolerance.
    loss_bf16 = jax.block_until_ready(
        instance_loss(z_i, z_j, temperature=temperature))
    assert jnp.allclose(loss_bf16, ref, rtol=2e-2, atol=2e-2), (loss_bf16, ref)

    print("KERNEL_OK")
</pallas_src>

<mosaic_0001>
module attributes {stable_mosaic.version = 11 : i64} {
  func.func @kernel(%arg0: i32, %arg1: memref<32x32xf32, #tpu.memory_space<vmem>>, %arg2: memref<1x1x16xf32, #tpu.memory_space<vmem>>) attributes {dimension_semantics = [#tpu.dimension_semantics<parallel>], iteration_bounds = array<i64: 2>, scalar_prefetch = 0 : i64, scratch_operands = 0 : i64, tpu.core_type = #tpu.core_type<tc>, window_params = [{pipeline_mode = #tpu.pipeline_mode<synchronous>, transform_indices = @transform_0, window_bounds = array<i64: 32, 32>}, {transform_indices = @transform_1, window_bounds = array<i64: 1, 1, 16>}]} {
    %c16_i32 = arith.constant 16 : i32
    %0 = arith.muli %arg0, %c16_i32 : i32
    %1 = tpu.assume_multiple %0, 16 : i32
    %c1_i32 = arith.constant 1 : i32
    %2 = arith.addi %arg0, %c1_i32 : i32
    %c2_i32 = arith.constant 2 : i32
    %c0_i32 = arith.constant 0 : i32
    %3 = arith.cmpi eq, %c2_i32, %c0_i32 : i32
    %c1_i32_0 = arith.constant 1 : i32
    %4 = arith.select %3, %c1_i32_0, %c2_i32 : i32
    %5 = arith.remsi %2, %4 : i32
    %c0_i32_1 = arith.constant 0 : i32
    %6 = arith.cmpi ne, %5, %c0_i32_1 : i32
    %c0_i32_2 = arith.constant 0 : i32
    %7 = arith.cmpi slt, %5, %c0_i32_2 : i32
    %c0_i32_3 = arith.constant 0 : i32
    %8 = arith.cmpi slt, %4, %c0_i32_3 : i32
    %9 = arith.xori %7, %8 : i1
    %10 = arith.andi %9, %6 : i1
    %11 = arith.addi %5, %4 : i32
    %12 = arith.select %10, %11, %5 : i32
    %c16_i32_4 = arith.constant 16 : i32
    %13 = arith.muli %12, %c16_i32_4 : i32
    %14 = tpu.assume_multiple %13, 16 : i32
    %15 = arith.index_cast %1 : i32 to index
    %c0 = arith.constant 0 : index
    %16 = vector.load %arg1[%15, %c0] : memref<32x32xf32, #tpu.memory_space<vmem>>, vector<16x32xf32>
    %17 = arith.index_cast %14 : i32 to index
    %c0_5 = arith.constant 0 : index
    %18 = vector.load %arg1[%17, %c0_5] : memref<32x32xf32, #tpu.memory_space<vmem>>, vector<16x32xf32>
    %cst = arith.constant 2.000000e+00 : f32
    %19 = vector.broadcast %cst : f32 to vector<16x32xf32>
    %20 = arith.mulf %16, %19 : vector<16x32xf32>
    %c0_6 = arith.constant 0 : index
    %c0_7 = arith.constant 0 : index
    %21 = vector.load %arg1[%c0_6, %c0_7] : memref<32x32xf32, #tpu.memory_space<vmem>>, vector<32x32xf32>
    %cst_8 = arith.constant dense<0.000000e+00> : vector<16x32xf32>
    %22 = tpu.matmul %20, %21, %cst_8 {dimension_numbers = #tpu.dot_dimension_numbers<[1], [1], [0], [0], [0, 0, 1, 0], [], []>} : vector<16x32xf32>, vector<32x32xf32>, vector<16x32xf32> -> vector<16x32xf32>
    %23 = tpu.iota {dimensions = array<i32: 1>} : vector<16x32xi32>
    %24 = tpu.iota {dimensions = array<i32: 0>} : vector<16x32xi32>
    %25 = vector.broadcast %1 : i32 to vector<16x32xi32>
    %26 = arith.addi %25, %24 : vector<16x32xi32>
    %27 = arith.cmpi eq, %23, %26 : vector<16x32xi32>
    %cst_9 = arith.constant -1.000000e+30 : f32
    %28 = vector.broadcast %cst_9 : f32 to vector<16x32xf32>
    %29 = arith.select %27, %28, %22 : vector<16x32xi1>, vector<16x32xf32>
    %30 = arith.mulf %20, %18 : vector<16x32xf32>
    %cst_10 = arith.constant dense<0.000000e+00> : vector<16xf32>
    %31 = vector.multi_reduction <add>, %30, %cst_10 [1] : vector<16x32xf32> to vector<16xf32>
    %cst_11 = arith.constant dense<0xFF800000> : vector<16xf32>
    %32 = vector.multi_reduction <maximumf>, %29, %cst_11 [1] : vector<16x32xf32> to vector<16xf32>
    %33 = vector.shape_cast %32 : vector<16xf32> to vector<16x1xf32>
    %34 = vector.broadcast %33 : vector<16x1xf32> to vector<16x32xf32>
    %35 = arith.subf %29, %34 : vector<16x32xf32>
    %36 = math.exp %35 : vector<16x32xf32>
    %cst_12 = arith.constant dense<0.000000e+00> : vector<16xf32>
    %37 = vector.multi_reduction <add>, %36, %cst_12 [1] : vector<16x32xf32> to vector<16xf32>
    %38 = vector.shape_cast %33 : vector<16x1xf32> to vector<16xf32>
    %39 = math.log %37 : vector<16xf32>
    %40 = arith.addf %38, %39 : vector<16xf32>
    %41 = arith.subf %40, %31 : vector<16xf32>
    %c0_13 = arith.constant 0 : index
    %c0_14 = arith.constant 0 : index
    %c0_15 = arith.constant 0 : index
    %42 = vector.load %arg2[%c0_13, %c0_14, %c0_15] : memref<1x1x16xf32, #tpu.memory_space<vmem>>, vector<1x1x16xf32>
    %43 = vector.shape_cast %42 : vector<1x1x16xf32> to vector<16xf32>
    %44 = vector.shape_cast %41 : vector<16xf32> to vector<1x1x16xf32>
    tpu.vector_store %arg2[%c0_13, %c0_14, %c0_15], %44 {strides = array<i32>} : memref<1x1x16xf32, #tpu.memory_space<vmem>>, vector<1x1x16xf32>,
    return
  }
  func.func @transform_0(%arg0: i32) -> (i32, i32) {
    %c0_i32 = arith.constant 0 : i32
    %c0_i32_0 = arith.constant 0 : i32
    %c0_i32_1 = arith.constant 0 : i32
    return %c0_i32, %c0_i32_0 : i32, i32
  }
  func.func @transform_1(%arg0: i32) -> (i32, i32, i32) {
    %c0_i32 = arith.constant 0 : i32
    %c0_i32_0 = arith.constant 0 : i32
    %c0_i32_1 = arith.constant 0 : i32
    return %arg0, %c0_i32, %c0_i32_0 : i32, i32, i32
  }
}

</mosaic_0001>

<llo_original>
// kernel: instance_loss.1
$region0: #{instance_loss.1}
  #allocation0 [shape = 'u32[]', space=smem, size = 0x4, offset = 0x4, fixed_abs, tag = 'smem constant byte address 0x4 - core index']
  #allocation1 [shape = 'u32[144,128]{1,0:T(1,128)}', space=vmem, size = 0x12000, scoped, tag = 'internal scratch']
  %s0 = inlined_call_operand.vmem [shape: f32[32,32], index: 0, kind: input, shape index: {}]
  %s1 = inlined_call_operand.vmem [shape: f32[2,1,16], index: 1, kind: output, shape index: {}]
  %s2 = sld [smem:[#allocation0]]
  $region37: #{instance_loss.1} parent=0
    _
  %s4 = ssub.s32 1, %s2
  %s5 = scalar_select 0, %s4, %s2
  loop: start=0, step=1, limit=4
  $region2: #{instance_loss.1} parent=0 // loop_pre_header
    _
  $region3: #{instance_loss.1} parent=0 // loop_header
    %s7 = sphi 0, %s11
    %p8 = scmp.ge.s32.totalorder %s7, 4
    %s15 = sphi 0, %s15
    %s17 = sphi 0, %s15
    %s18 = sphi 0, %s17
    %s32 = sphi 0, %s18
    %s38 = sphi 0, %s40
    %s41 = sphi 0, %s38
    %s42 = sphi 0, %s41
    %s58 = sphi 0, %s42
  $region4: #{instance_loss.1} parent=0 // loop_header_branch
    %10 = sbr.rel (%p8) target = $region8
  $region5: #{instance_loss.1} parent=0 // loop_body
    %s12 = ssub.s32 %s7, 1
    %s13 = ssub.s32 %s7, 2
    %s14 = sadd.s32 %s7, 1
    %s16 = sadd.s32 %s15, 1
    %p19 = scmp.eq.s32.totalorder %s7, 1
    %p20 = scmp.ne.s32.totalorder %s15, %s17
    %p21 = scmp.eq.s32.totalorder %s7, 0
    %p22 = por %p20, %p21
    %p23 = scmp.ne.s32.totalorder %s15, %s17
    %p24 = scmp.eq.s32.totalorder %s12, 1
    %p25 = por %p23, %p24
    %p26 = scmp.ne.s32.totalorder %s17, %s18
    %p27 = scmp.eq.s32.totalorder %s12, 0
    %p28 = por %p26, %p27
    %p29 = scmp.ne.s32.totalorder %s17, %s18
    %p30 = scmp.eq.s32.totalorder %s13, 1
    %p31 = por %p29, %p30
    %p33 = scmp.ne.s32.totalorder %s18, %s32
    %p34 = scmp.eq.s32.totalorder %s13, 0
    %p35 = por %p33, %p34
    %s36 = ssub.s32 %s7, %s14
    %p37 = scmp.eq.s32.totalorder %s36, 0
    %s39 = sadd.s32 %s38, 1
    %s40 = scalar_select %p37, %s38, %s39
    %p43 = pneg %p37
    %p44 = scmp.eq.s32.totalorder %s7, 1
    %p45 = por %p43, %p44
    %p46 = scmp.ne.s32.totalorder %s38, %s41
    %p47 = scmp.eq.s32.totalorder %s7, 0
    %p48 = por %p46, %p47
    %p49 = scmp.ne.s32.totalorder %s38, %s41
    %p50 = scmp.eq.s32.totalorder %s12, 1
    %p51 = por %p49, %p50
    %p52 = scmp.ne.s32.totalorder %s41, %s42
    %p53 = scmp.eq.s32.totalorder %s12, 0
    %p54 = por %p52, %p53
    %p55 = scmp.ne.s32.totalorder %s41, %s42
    %p56 = scmp.eq.s32.totalorder %s13, 1
    %p57 = por %p55, %p56
    %p59 = scmp.ne.s32.totalorder %s42, %s58
    %p60 = scmp.eq.s32.totalorder %s13, 0
    %p61 = por %p59, %p60
    %p62 = scmp.le.s32.totalorder 1, %s7
    %p63 = scmp.lt.s32.totalorder %s7, 3
    %p64 = pnand %p62, %p63
    %p65 = pneg %p64
    // Predicated region
    $region9: #{instance_loss.1} parent=5 // pred_check
      _
    $region10: #{instance_loss.1} parent=5 // pred_check_branch
      %67 = sbr.rel (%p64) target = $region12
    $region11: #{instance_loss.1} parent=5 // pred_region
      %s68 = ssub.s32 %s7, 1
      // Predicated region
      $region13: #{instance_loss.1} parent=11 // pred_check
        %p69 = pneg %p28
      $region14: #{instance_loss.1} parent=11 // pred_check_branch
        %71 = sbr.rel (%p69) target = $region16
      $region15: #{instance_loss.1} parent=11 // pred_region
        _
      $region16: #{instance_loss.1} parent=11 // pred_fallthru
        _
    $region12: #{instance_loss.1} parent=5 // pred_fallthru
      _
    %p72 = scmp.lt.s32.totalorder %s7, 2
    // Predicated region
    $region17: #{instance_loss.1} parent=5 // pred_check
      %p73 = pneg %p72
    $region18: #{instance_loss.1} parent=5 // pred_check_branch
      %75 = sbr.rel (%p73) target = $region20
    $region19: #{instance_loss.1} parent=5 // pred_region
      _
    $region20: #{instance_loss.1} parent=5 // pred_fallthru
      _
    %p76 = scmp.le.s32.totalorder 1, %s7
    %p77 = scmp.lt.s32.totalorder %s7, 3
    %p78 = pnand %p76, %p77
    %p79 = pneg %p78
    // Predicated region
    $region21: #{instance_loss.1} parent=5 // pred_check
      _
    $region22: #{instance_loss.1} parent=5 // pred_check_branch
      %81 = sbr.rel (%p78) target = $region24
    $region23: #{instance_loss.1} parent=5 // pred_region
      %s82 = ssub.s32 %s7, 1
      %p83 = pneg %p28
      %p84 = pneg %p25
      %p85 = pneg %p54
      %p86 = pneg %p51
      %p87 = scmp.lt.s32.totalorder %s12, 1
      %s88 = scalar_select %p87, %s12, 1
      %s89 = scalar_lea.vmem %s1, %s88
      %p90 = scmp.lt.s32.totalorder %s12, 1
      %s91 = scalar_select %p90, %s12, 1
      %s92 = scalar_lea.vmem %s1, %s91
      %s93 = smul.u32 %s12, 16
      %s94 = sadd.s32 %s12, 1
      %p95 = scmp.lt.s32.totalorder %s94, 0
      %s96 = ssub.s32 0, %s94
      %s97 = scalar_select %p95, %s96, %s94
      %s98 = sand.u32 %s97, 1
      %s99 = ssub.s32 0, %s98
      %s100 = scalar_select %p95, %s99, %s98
      %p101 = scmp.ne.s32.totalorder %s100, 0
      %p102 = scmp.lt.s32.totalorder %s100, 0
      %p103 = pnand %p102, %p101
      %p104 = pneg %p103
      %s105 = sadd.s32 %s100, 2
      %s106 = scalar_select %p104, %s105, %s100
      %s107 = smul.u32 %s106, 16
      %s108 = scalar_lea.vmem %s0, %s93
      %v109 = vld [vmem:[%s108] sm:$0xff]
      %v110 = vld [vmem:[%s108 + $0x8] sm:$0xff]
      %s111 = scalar_lea.vmem %s0, %s107
      %v112 = vld [vmem:[%s111] sm:$0xff]
      %v113 = vld [vmem:[%s111 + $0x8] sm:$0xff]
      %v114 = vmul.f32 %v109, 2.0
      %v115 = vmul.f32 %v110, 2.0
      %v116 = vld [vmem:[%s0] sm:$0xff]
      %v117 = vld [vmem:[%s0 + $0x8] sm:$0xff]
      %v118 = vld [vmem:[%s0 + $0x10] sm:$0xff]
      %v119 = vld [vmem:[%s0 + $0x18] sm:$0xff]
      %vm120 = vcmask 261120
      %v122 = vsel %vm120, %v114, 0
      %v125 = vsel %vm120, %v115, 0
      %v128 = vsel %vm120, %v116, 0
      %v131 = vsel %vm120, %v117, 0
      %v134 = vsel %vm120, %v118, 0
      %v137 = vsel %vm120, %v119, 0
      %139 = vmatprep.subr.mxu0 0.0
      %140 = vmatpush1.xpose.msra.mxu0 0.0
      %141 = vmatprep.subr.mxu0 0.0
      %142 = vmatpush1.xpose.msra.mxu0 0.0
      %143 = vmatprep.subr.mxu0 0.0
      %144 = vmatpush1.xpose.msra.mxu0 0.0
      %145 = vmatprep.subr.mxu0 0.0
      %146 = vmatpush1.xpose.msra.mxu0 0.0
      %147 = vmatprep.subr.mxu0 0.0
      %148 = vmatpush1.xpose.msra.mxu0 0.0
      %149 = vmatprep.subr.mxu0 0.0
      %150 = vmatpush1.xpose.msra.mxu0 0.0
      %151 = vmatprep.subr.mxu0 0.0
      %152 = vmatpush1.xpose.msra.mxu0 0.0
      %153 = vmatprep.subr.mxu0 0.0
      %154 = vmatpush1.xpose.msra.mxu0 0.0
      %155 = vmatprep.subr.mxu0 0.0
      %156 = vmatpush1.xpose.msra.mxu0 0.0
      %157 = vmatprep.subr.mxu0 0.0
      %158 = vmatpush1.xpose.msra.mxu0 0.0
      %159 = vmatprep.subr.mxu0 0.0
      %160 = vmatpush1.xpose.msra.mxu0 0.0
      %161 = vmatprep.subr.mxu0 0.0
      %162 = vmatpush1.xpose.msra.mxu0 0.0
      %163 = vmatprep.subr.mxu0 0.0
      %164 = vmatpush1.xpose.msra.mxu0 %v137
      %165 = vmatprep.subr.mxu0 0.0
      %166 = vmatpush1.xpose.msra.mxu0 %v134
      %167 = vmatprep.subr.mxu0 0.0
      %168 = vmatpush1.xpose.msra.mxu0 %v131
      %169 = vmatprep.subr.mxu0 0.0
      %170 = vmatpush1.xpose.msra.mxu0 %v128
      %171 = vmatprep.subr.mxu0 0.0
      %172 = vmatpush2.xpose.msra.mxu0 0.0
      %173 = vmatprep.subr.mxu0 0.0
      %174 = vmatpush2.xpose.msra.mxu0 0.0
      %175 = vmatprep.subr.mxu0 0.0
      %176 = vmatpush2.xpose.msra.mxu0 0.0
      %177 = vmatprep.subr.mxu0 0.0
      %178 = vmatpush2.xpose.msra.mxu0 0.0
      %179 = vmatprep.subr.mxu0 0.0
      %180 = vmatpush2.xpose.msra.mxu0 0.0
      %181 = vmatprep.subr.mxu0 0.0
      %182 = vmatpush2.xpose.msra.mxu0 0.0
      %183 = vmatprep.subr.mxu0 0.0
      %184 = vmatpush2.xpose.msra.mxu0 0.0
      %185 = vmatprep.subr.mxu0 0.0
      %186 = vmatpush2.xpose.msra.mxu0 0.0
      %187 = vmatprep.subr.mxu0 0.0
      %188 = vmatpush2.xpose.msra.mxu0 0.0
      %189 = vmatprep.subr.mxu0 0.0
      %190 = vmatpush2.xpose.msra.mxu0 0.0
      %191 = vmatprep.subr.mxu0 0.0
      %192 = vmatpush2.xpose.msra.mxu0 0.0
      %193 = vmatprep.subr.mxu0 0.0
      %194 = vmatpush2.xpose.msra.mxu0 0.0
      %195 = vmatprep.subr.mxu0 0.0
      %196 = vmatpush2.xpose.msra.mxu0 0.0
      %197 = vmatprep.subr.mxu0 0.0
      %198 = vmatpush2.xpose.msra.mxu0 0.0
      %199 = vmatprep.subr.mxu0 0.0
      %200 = vmatpush2.xpose.msra.mxu0 0.0
      %201 = vmatprep.subr.mxu0 0.0
      %202 = vmatpush2.xpose.msra.mxu0 0.0
      %203 = vmatprep.mubr.f32.mxu0 0.0
      %204 = vmatmul.mubr.f32.gmra.mxu0 %v122
      %v205 = vpop.f32.mrf.mxu0
      %v206 = vadd.f32 0.0, %v205
      %v207 = vpop.f32.mrf.mxu0
      %208 = vmatprep.mubr.f32.mxu0 0.0
      %209 = vmatmul.mubr.f32.gmra.mxu0 %v125
      %v210 = vpop.f32.mrf.mxu0
      %v211 = vadd.f32 0.0, %v210
      %v212 = vpop.f32.mrf.mxu0
      %213 = vdwg.mxu0
      %v214 = vlaneseq
      %v215 = vand.u32 %v214, 127
      %v216 = vlaneseq
      %v217 = vshrl.u32 %v216, 7
      %v218 = vadd.s32 %v217, 8
      %v219 = vstv %s93
      %v220 = vadd.s32 %v219, %v217
      %v221 = vadd.s32 %v219, %v218
      %vm222 = vcmp.eq.s32.totalorder %v215, %v220
      %vm223 = vcmp.eq.s32.totalorder %v215, %v221
      %v224 = vsel %vm222, -1e+30, %v206
      %v225 = vsel %vm223, -1e+30, %v211
      %v226 = vmul.f32 %v114, %v112
      %v227 = vmul.f32 %v115, %v113
      %v228 = vsel %vm120, %v226, 0.0
      %229 = vadd.xlane.f32.xlu0 %v228
      %v230 = vpop.xlane.xlu0 %229
      %v231 = vsel %vm120, %v227, 0.0
      %232 = vadd.xlane.f32.xlu0 %v231
      %v233 = vpop.xlane.xlu0 %232
      %v234 = vsel %vm120, %v224, -inf
      %235 = vmax.xlane.f32.xlu0 %v234
      %v236 = vpop.xlane.xlu0 %235
      %v237 = vsel %vm120, %v225, -inf
      %238 = vmax.xlane.f32.xlu0 %v237
      %v239 = vpop.xlane.xlu0 %238
      %v240 = vsub.f32 %v224, %v236
      %v241 = vsub.f32 %v225, %v239
      %v242 = vmul.f32 %v240, 1.442695
      %v243 = vpow.pop %v242
      %v244 = vmul.f32 %v241, 1.442695
      %v245 = vpow.pop %v244
      %v246 = vsel %vm120, %v243, 0.0
      %247 = vadd.xlane.f32.xlu0 %v246
      %v248 = vpop.xlane.xlu0 %247
      %v249 = vsel %vm120, %v245, 0.0
      %250 = vadd.xlane.f32.xlu0 %v249
      %v251 = vpop.xlane.xlu0 %250
      %v252 = vlog2.pop %v248
      %v253 = vmul.f32 %v252, 0.6931472
      %v254 = vlog2.pop %v251
      %v255 = vmul.f32 %v254, 0.6931472
      %v256 = vadd.f32 %v236, %v253
      %v257 = vadd.f32 %v239, %v255
      %v258 = vsub.f32 %v256, %v230
      %v259 = vsub.f32 %v257, %v233
      %v262 = vlaneseq
      %v263 = vshrl.u32 %v262, 7
      %v264 = vsub.s32 %v215, %v263
      %v265 = vrot.slane %v258, %v264
      %v266 = vadd.s32 %v215, 4294967288
      %v267 = vlaneseq
      %v268 = vshrl.u32 %v267, 7
      %v269 = vsub.s32 %v266, %v268
      %v270 = vrot.slane %v259, %v269
      %vm271 = vcmask 130112
      %v272 = vsel %vm271, %v270, %v265
      %vm274 = vcmask 122880
      %275 = vst.msk [vmem:[%s92] sm:$0x1] %vm274, %v272
      %p276 = scmp.lt.s32.totalorder %s12, 1
      %s277 = scalar_select %p276, %s12, 1
      %s278 = scalar_lea.vmem %s1, %s277
      // Predicated region
      $region25: #{instance_loss.1} parent=23 // pred_check
        %p279 = pneg %p51
      $region26: #{instance_loss.1} parent=23 // pred_check_branch
        %281 = sbr.rel (%p279) target = $region28
      $region27: #{instance_loss.1} parent=23 // pred_region
        _
      $region28: #{instance_loss.1} parent=23 // pred_fallthru
        _
    $region24: #{instance_loss.1} parent=5 // pred_fallthru
      _
    %p282 = scmp.le.s32.totalorder 2, %s7
    // Predicated region
    $region29: #{instance_loss.1} parent=5 // pred_check
      %p283 = pneg %p282
    $region30: #{instance_loss.1} parent=5 // pred_check_branch
      %285 = sbr.rel (%p283) target = $region32
    $region31: #{instance_loss.1} parent=5 // pred_region
      %s286 = ssub.s32 %s7, 2
      // Predicated region
      $region33: #{instance_loss.1} parent=31 // pred_check
        %p287 = pneg %p57
      $region34: #{instance_loss.1} parent=31 // pred_check_branch
        %289 = sbr.rel (%p287) target = $region36
      $region35: #{instance_loss.1} parent=31 // pred_region
        %p290 = scmp.lt.s32.totalorder %s13, 1
        %s291 = scalar_select %p290, %s13, 1
        %s292 = scalar_lea.vmem %s1, %s291
      $region36: #{instance_loss.1} parent=31 // pred_fallthru
        _
    $region32: #{instance_loss.1} parent=5 // pred_fallthru
      _
  $region6: #{instance_loss.1} parent=0 // loop_footer
    %s11 = sadd.s32 1, %s7
  $region7: #{instance_loss.1} parent=0 // loop_footer_branch
    %6 = sbr.rel target = $region3
  $region8: #{instance_loss.1} parent=0 // loop_exit
    _

</llo_original>
